<compile_context>
chip_gen: v7x
topology: tpu7x:2x2x1
jax: 0.10.0
libtpu: 0.0.40
codegen_flags: <defaults>
</compile_context>

<pallas_src>
import functools

import jax
import jax.numpy as jnp
from jax import lax
from jax.experimental import pallas as pl
from jax.experimental.pallas import tpu as pltpu

_LANES = 128
_SUBLANES = 8
# (8192, 128) f32 block = 4 MiB; 2 inputs x 2 pipeline buffers = 16 MiB, under
# the explicit 32 MiB VMEM limit below on every generation (v5e/v6e physical
# VMEM 128 MiB, v7x 64 MiB with a 32 MiB scoped default).
_MAX_TILE_ROWS = 8192
_NUM_PARALLEL = 2                       # leading "parallel" axis: both TCs on v7x
_VMEM_LIMIT_BYTES = 32 * 1024 * 1024


def _round_up(x, m):
    return (x + m - 1) // m * m


# ---------------------------------------------------------------------------
# Fused  mean( s_c * |x1 - x2| )  kernel
# ---------------------------------------------------------------------------
def _fused_contrast_l1_kernel(scale_ref, a_ref, b_ref, acc_ref, *,
                              tile_rpp, rpp, planes_per_chunk, num_t,
                              needs_mask):
    """One grid step: acc(8,128) += s_plane * per-lane-sum(|a - b|) of the tile.

    scale_ref : (B*C,) f32 per-plane channel scale in SMEM.
    a_ref/b_ref : (1, tile_rpp, 128) tiles of one channel plane (input dtype).
    acc_ref   : (1, 8, 128) f32 accumulator, resident across the reduction axes.
    """
    i = pl.program_id(0)        # parallel (megacore) chunk
    p = pl.program_id(1)        # plane within chunk
    t = pl.program_id(2)        # tile within plane (reduction axis, last)

    @pl.when((p == 0) & (t == 0))
    def _():
        acc_ref[...] = jnp.zeros_like(acc_ref)

    plane = i * planes_per_chunk + p
    s = scale_ref[plane]        # scalar per-channel scale (SMEM read)

    d = jnp.abs(a_ref[...].astype(jnp.float32) - b_ref[...].astype(jnp.float32))

    def _accumulate(x):
        # Fold the tile into (8,128) per-lane partial sums: pure VPU vreg adds,
        # no cross-lane XLU reduction inside the grid loop.  The per-channel
        # scale is applied to the folded (8,128) partial (1024 mults per step).
        part = x.reshape(tile_rpp // _SUBLANES, _SUBLANES, _LANES).sum(axis=0)
        acc_ref[...] += (part * s)[None]

    if not needs_mask:
        _accumulate(d)
    else:
        # Only the last tile of a plane can overhang; interior tiles skip all
        # mask work (gated behind pl.when -> no per-tile iota on the hot path).
        @pl.when(t < num_t - 1)
        def _():
            _accumulate(d)

        @pl.when(t == num_t - 1)
        def _():
            # Row-based mask (no flat element index => no int32 overflow).
            row = t * tile_rpp + lax.broadcasted_iota(
                jnp.int32, (1, tile_rpp, _LANES), 1)
            _accumulate(jnp.where(row < rpp, d, 0.0))


def fused_contrast_l1(x1, x2, channel_scale):
    """mean over all elements of channel_scale[c] * |x1 - x2| for NCHW inputs."""
    assert x1.shape == x2.shape and x1.ndim == 4
    B, C, H, W = x1.shape
    assert C == channel_scale.shape[0]
    n = B * C * H * W

    hw = H * W
    hw_pad = _round_up(hw, _LANES)
    if hw_pad != hw:
        # Rare fallback (plane size not a multiple of 128): zero-pad each
        # channel plane; the pad is zero in both inputs so it adds |0-0| = 0.
        x1 = jnp.pad(x1.reshape(B * C, hw), ((0, 0), (0, hw_pad - hw)))
        x2 = jnp.pad(x2.reshape(B * C, hw), ((0, 0), (0, hw_pad - hw)))

    num_planes = B * C
    rpp = hw_pad // _LANES                          # lane-dense rows per plane
    a3 = x1.reshape(num_planes, rpp, _LANES)        # free, lane-dense views
    b3 = x2.reshape(num_planes, rpp, _LANES)

    tile_rpp = min(_MAX_TILE_ROWS, _round_up(rpp, _SUBLANES))
    num_t = pl.cdiv(rpp, tile_rpp)
    needs_mask = tile_rpp * num_t != rpp

    # 2-way megacore split only when it divides evenly: never create duplicated
    # blocks that re-stream HBM just to be masked away.
    num_par = _NUM_PARALLEL if num_planes % _NUM_PARALLEL == 0 else 1
    planes_per_chunk = num_planes // num_par

    # Per-plane channel scale, read as a scalar from SMEM inside the kernel.
    plane_scale = jnp.tile(channel_scale.astype(jnp.float32), B)   # (B*C,)

    kernel = functools.partial(
        _fused_contrast_l1_kernel,
        tile_rpp=tile_rpp, rpp=rpp,
        planes_per_chunk=planes_per_chunk,
        num_t=num_t, needs_mask=needs_mask,
    )

    def data_map(i, p, t):
        return (i * planes_per_chunk + p, t, 0)

    partials = pl.pallas_call(
        kernel,
        out_shape=jax.ShapeDtypeStruct((num_par, _SUBLANES, _LANES),
                                       jnp.float32),
        grid=(num_par, planes_per_chunk, num_t),
        in_specs=[
            pl.BlockSpec(memory_space=pltpu.MemorySpace.SMEM),        # scales
            pl.BlockSpec((1, tile_rpp, _LANES), data_map),            # x1 tile
            pl.BlockSpec((1, tile_rpp, _LANES), data_map),            # x2 tile
        ],
        out_specs=pl.BlockSpec((1, _SUBLANES, _LANES), lambda i, p, t: (i, 0, 0)),
        compiler_params=pltpu.CompilerParams(
            dimension_semantics=("parallel", "arbitrary", "arbitrary"),
            vmem_limit_bytes=_VMEM_LIMIT_BYTES),
    )(plane_scale, a3, b3)

    # Single cheap cross-lane reduce + mean in the wrapper.
    return jnp.sum(partials) / jnp.float32(n)


# ---------------------------------------------------------------------------
# Module wrapper
# ---------------------------------------------------------------------------
def _mosaic_shuffle(x, key, block):
    # Plain-JAX port of Mosaic.__call__ (random block permutation).  Pure data
    # movement / gather; not implemented as a Pallas kernel.
    B, c, H, W = x.shape
    m, n = H // block, W // block
    x = x.reshape(B, c, m, block, n, block)
    x = x.transpose(0, 2, 4, 1, 3, 5).reshape(B, m * n, c, block, block)
    perm = jax.random.permutation(key, m * n)
    x = x[:, perm]
    x = x.reshape(B, m, n, c, block, block).transpose(0, 3, 1, 4, 2, 5)
    return x.reshape(B, c, H, W)


class Vgg19ContrastLossPallas:
    """Forward pass of Vgg19ContrastLoss as one fused Pallas reduction."""

    def __init__(self, mosaic=False, mosaic_size=16):
        self.mosaic = mosaic
        self.mosaic_size = mosaic_size
        mean = jnp.asarray([0.485, 0.456, 0.406], jnp.float32)
        std = jnp.asarray([0.229, 0.224, 0.225], jnp.float32)
        # re_norm: (x+1)/2, then norm: (y-mean)/std  =>  y = x*scale_c + bias_c.
        # The bias cancels in |y1 - y2| while the feature extractor is identity,
        # so only the per-channel scale is needed.
        self._scale = 1.0 / (2.0 * std)

    def _features(self, x):
        # TODO(synk): pretrained torchvision VGG19 `features` backbone needs
        # external weights and is not reproducible here; identity features are
        # used.  With a real VGG19, drop the scaled-L1 algebraic fold and fuse
        # the renorm affine into the first kernel that reads x instead.
        return x

    def __call__(self, input1, input2, *, key=None):
        if self.mosaic:
            key = jax.random.PRNGKey(0) if key is None else key
            k1, k2 = jax.random.split(key)
            # The Mosaic block shuffle permutes spatial blocks within each
            # channel, so it commutes with the per-channel renorm affine and
            # can be applied to the raw inputs before the fused kernel.
            input1 = _mosaic_shuffle(input1, k1, self.mosaic_size)
            input2 = _mosaic_shuffle(input2, k2, self.mosaic_size)
        f1 = self._features(input1)
        f2 = lax.stop_gradient(self._features(input2))   # .detach()
        # mean |norm(renorm(f1)) - norm(renorm(f2))|  ==  mean  s_c * |f1 - f2|
        return fused_contrast_l1(f1, f2, self._scale)


if __name__ == "__main__":
    key = jax.random.PRNGKey(0)
    k1, k2 = jax.random.split(key)
    shape = (2, 3, 16, 16)                        # NCHW images in [-1, 1]
    x1 = jax.random.uniform(k1, shape, jnp.float32, -1.0, 1.0)
    x2 = jax.random.uniform(k2, shape, jnp.float32, -1.0, 1.0)

    loss_fn = Vgg19ContrastLossPallas(mosaic=False)
    result = jax.jit(lambda a, b: loss_fn(a, b))(x1, x2)
    result = jax.block_until_ready(result)

    # Pure-JAX reference (normalization + L1; features are identity, see TODO).
    mean = jnp.asarray([0.485, 0.456, 0.406], jnp.float32).reshape(1, 3, 1, 1)
    std = jnp.asarray([0.229, 0.224, 0.225], jnp.float32).reshape(1, 3, 1, 1)
    norm_ref = lambda v: ((v + 1.0) / 2.0 - mean) / std
    ref = jnp.mean(jnp.abs(norm_ref(x1) - norm_ref(x2)))

    assert jnp.allclose(result, ref, rtol=1e-4, atol=1e-6), (result, ref)
    print("KERNEL_OK")
</pallas_src>

<mosaic_0001>
module attributes {stable_mosaic.version = 11 : i64} {
  func.func @_fused_contrast_l1_kernel(%arg0: i32, %arg1: i32, %arg2: i32, %arg3: memref<6xf32, #tpu.memory_space<smem>>, %arg4: memref<1x8x128xf32, #tpu.memory_space<vmem>>, %arg5: memref<1x8x128xf32, #tpu.memory_space<vmem>>, %arg6: memref<1x8x128xf32, #tpu.memory_space<vmem>>) attributes {dimension_semantics = [#tpu.dimension_semantics<parallel>, #tpu.dimension_semantics<arbitrary>, #tpu.dimension_semantics<arbitrary>], iteration_bounds = array<i64: 2, 3, 1>, scalar_prefetch = 0 : i64, scratch_operands = 0 : i64, tpu.core_type = #tpu.core_type<tc>, window_params = [{transform_indices = @transform_0, window_bounds = array<i64: 6>}, {transform_indices = @transform_1, window_bounds = array<i64: 1, 8, 128>}, {transform_indices = @transform_2, window_bounds = array<i64: 1, 8, 128>}, {transform_indices = @transform_3, window_bounds = array<i64: 1, 8, 128>}]} {
    %c0_i32 = arith.constant 0 : i32
    %0 = arith.cmpi eq, %arg1, %c0_i32 : i32
    %c0_i32_0 = arith.constant 0 : i32
    %1 = arith.cmpi eq, %arg2, %c0_i32_0 : i32
    %2 = arith.andi %0, %1 : i1
    %3 = arith.extui %2 : i1 to i32
    %c0_i32_1 = arith.constant 0 : i32
    %4 = arith.cmpi ne, %3, %c0_i32_1 : i32
    scf.if %4 {
      %cst = arith.constant 0.000000e+00 : f32
      %19 = vector.broadcast %cst : f32 to vector<1x8x128xf32>
      %c0_11 = arith.constant 0 : index
      %c0_12 = arith.constant 0 : index
      %c0_13 = arith.constant 0 : index
      %20 = vector.load %arg6[%c0_11, %c0_12, %c0_13] : memref<1x8x128xf32, #tpu.memory_space<vmem>>, vector<1x8x128xf32>
      tpu.vector_store %arg6[%c0_11, %c0_12, %c0_13], %19 {strides = array<i32>} : memref<1x8x128xf32, #tpu.memory_space<vmem>>, vector<1x8x128xf32>,
    } else {
    }
    %c3_i32 = arith.constant 3 : i32
    %5 = arith.muli %arg0, %c3_i32 : i32
    %6 = arith.addi %5, %arg1 : i32
    %7 = arith.index_cast %6 : i32 to index
    %8 = memref.load %arg3[%7] : memref<6xf32, #tpu.memory_space<smem>>
    %c0 = arith.constant 0 : index
    %c0_2 = arith.constant 0 : index
    %c0_3 = arith.constant 0 : index
    %9 = vector.load %arg4[%c0, %c0_2, %c0_3] : memref<1x8x128xf32, #tpu.memory_space<vmem>>, vector<1x8x128xf32>
    %c0_4 = arith.constant 0 : index
    %c0_5 = arith.constant 0 : index
    %c0_6 = arith.constant 0 : index
    %10 = vector.load %arg5[%c0_4, %c0_5, %c0_6] : memref<1x8x128xf32, #tpu.memory_space<vmem>>, vector<1x8x128xf32>
    %11 = arith.subf %9, %10 : vector<1x8x128xf32>
    %12 = math.absf %11 : vector<1x8x128xf32>
    %c0_i32_7 = arith.constant 0 : i32
    %13 = arith.cmpi slt, %arg2, %c0_i32_7 : i32
    %14 = arith.extui %13 : i1 to i32
    %c0_i32_8 = arith.constant 0 : i32
    %15 = arith.cmpi ne, %14, %c0_i32_8 : i32
    scf.if %15 {
      %cst = arith.constant dense<0.000000e+00> : vector<8x128xf32>
      %19 = vector.multi_reduction <add>, %12, %cst [0] : vector<1x8x128xf32> to vector<8x128xf32>
      %c0_11 = arith.constant 0 : index
      %c0_12 = arith.constant 0 : index
      %c0_13 = arith.constant 0 : index
      %20 = vector.load %arg6[%c0_11, %c0_12, %c0_13] : memref<1x8x128xf32, #tpu.memory_space<vmem>>, vector<1x8x128xf32>
      %21 = vector.broadcast %8 : f32 to vector<8x128xf32>
      %22 = arith.mulf %19, %21 : vector<8x128xf32>
      %23 = vector.shape_cast %22 : vector<8x128xf32> to vector<1x8x128xf32>
      %24 = arith.addf %20, %23 : vector<1x8x128xf32>
      %c0_14 = arith.constant 0 : index
      %c0_15 = arith.constant 0 : index
      %c0_16 = arith.constant 0 : index
      %25 = vector.load %arg6[%c0_14, %c0_15, %c0_16] : memref<1x8x128xf32, #tpu.memory_space<vmem>>, vector<1x8x128xf32>
      tpu.vector_store %arg6[%c0_14, %c0_15, %c0_16], %24 {strides = array<i32>} : memref<1x8x128xf32, #tpu.memory_space<vmem>>, vector<1x8x128xf32>,
    } else {
    }
    %c0_i32_9 = arith.constant 0 : i32
    %16 = arith.cmpi eq, %arg2, %c0_i32_9 : i32
    %17 = arith.extui %16 : i1 to i32
    %c0_i32_10 = arith.constant 0 : i32
    %18 = arith.cmpi ne, %17, %c0_i32_10 : i32
    scf.if %18 {
      %c8_i32 = arith.constant 8 : i32
      %19 = arith.muli %arg2, %c8_i32 : i32
      %20 = tpu.iota {dimensions = array<i32: 1>} : vector<1x8x128xi32>
      %21 = vector.broadcast %19 : i32 to vector<1x8x128xi32>
      %22 = arith.addi %21, %20 : vector<1x8x128xi32>
      %c2_i32 = arith.constant 2 : i32
      %23 = vector.broadcast %c2_i32 : i32 to vector<1x8x128xi32>
      %24 = arith.cmpi slt, %22, %23 : vector<1x8x128xi32>
      %cst = arith.constant 0.000000e+00 : f32
      %25 = vector.broadcast %cst : f32 to vector<1x8x128xf32>
      %26 = arith.select %24, %12, %25 : vector<1x8x128xi1>, vector<1x8x128xf32>
      %cst_11 = arith.constant dense<0.000000e+00> : vector<8x128xf32>
      %27 = vector.multi_reduction <add>, %26, %cst_11 [0] : vector<1x8x128xf32> to vector<8x128xf32>
      %c0_12 = arith.constant 0 : index
      %c0_13 = arith.constant 0 : index
      %c0_14 = arith.constant 0 : index
      %28 = vector.load %arg6[%c0_12, %c0_13, %c0_14] : memref<1x8x128xf32, #tpu.memory_space<vmem>>, vector<1x8x128xf32>
      %29 = vector.broadcast %8 : f32 to vector<8x128xf32>
      %30 = arith.mulf %27, %29 : vector<8x128xf32>
      %31 = vector.shape_cast %30 : vector<8x128xf32> to vector<1x8x128xf32>
      %32 = arith.addf %28, %31 : vector<1x8x128xf32>
      %c0_15 = arith.constant 0 : index
      %c0_16 = arith.constant 0 : index
      %c0_17 = arith.constant 0 : index
      %33 = vector.load %arg6[%c0_15, %c0_16, %c0_17] : memref<1x8x128xf32, #tpu.memory_space<vmem>>, vector<1x8x128xf32>
      tpu.vector_store %arg6[%c0_15, %c0_16, %c0_17], %32 {strides = array<i32>} : memref<1x8x128xf32, #tpu.memory_space<vmem>>, vector<1x8x128xf32>,
    } else {
    }
    return
  }
  func.func @transform_0(%arg0: i32, %arg1: i32, %arg2: i32) -> i32 {
    %c0_i32 = arith.constant 0 : i32
    %c0_i32_0 = arith.constant 0 : i32
    return %c0_i32 : i32
  }
  func.func @transform_1(%arg0: i32, %arg1: i32, %arg2: i32) -> (i32, i32, i32) {
    %c3_i32 = arith.constant 3 : i32
    %0 = arith.muli %arg0, %c3_i32 : i32
    %1 = arith.addi %0, %arg1 : i32
    %c0_i32 = arith.constant 0 : i32
    %c0_i32_0 = arith.constant 0 : i32
    return %1, %arg2, %c0_i32 : i32, i32, i32
  }
  func.func @transform_2(%arg0: i32, %arg1: i32, %arg2: i32) -> (i32, i32, i32) {
    %c3_i32 = arith.constant 3 : i32
    %0 = arith.muli %arg0, %c3_i32 : i32
    %1 = arith.addi %0, %arg1 : i32
    %c0_i32 = arith.constant 0 : i32
    %c0_i32_0 = arith.constant 0 : i32
    return %1, %arg2, %c0_i32 : i32, i32, i32
  }
  func.func @transform_3(%arg0: i32, %arg1: i32, %arg2: i32) -> (i32, i32, i32) {
    %c0_i32 = arith.constant 0 : i32
    %c0_i32_0 = arith.constant 0 : i32
    %c0_i32_1 = arith.constant 0 : i32
    return %arg0, %c0_i32, %c0_i32_0 : i32, i32, i32
  }
}

</mosaic_0001>

<llo_original>
// kernel: tile.7
$region0: #{tile.7}
  %s0 = inlined_call_operand.vmem [shape: f32[2,3], index: 0, kind: input, shape index: {}]
  %s1 = inlined_call_operand.vmem [shape: f32[6], index: 1, kind: output, shape index: {}]
  $region1: #{tile.7} parent=0
    #allocation0 [shape = 'u8[4096]{0}', space=vmem, size = 0x1000, scoped, tag = 'scoped mem for output reshape']
    #allocation1 [shape = 'u8[4096]{0}', space=vmem, size = 0x1000, scoped, tag = 'scoped mem for input reshape']
    %s3 = sshllo.u32 0, 2
    %v4 = vld [vmem:[%s0] sm:%s3]
    %5 = vst [vmem:[#allocation1] sm:%s3] %v4
    %v6 = vld [vmem:[#allocation1] sm:$0x1]
    %vm7 = vcmask 23552
    %8 = vst.msk [vmem:[#allocation0] sm:$0x1] %vm7, %v6
    %s9 = scalar_lea.vmem [#allocation1], 1
    %v10 = vld [vmem:[%s9] sm:$0x1]
    %11 = vrot.lane.b32.xlu0 %v10, 3
    %v12 = vpop.permute.xlu0 %11
    %vm13 = vcmask 48152
    %14 = vst.msk [vmem:[#allocation0] sm:$0x1] %vm13, %v12
    %s16 = sshllo.u32 0, 1
    %v18 = vld [vmem:[#allocation0] sm:%s16]
    %s19 = sshllo.u32 0, 1
    %20 = vst [vmem:[%s1] sm:%s19] %v18

// kernel: tile.6
$region0: #{tile.6}
  #allocation0 [shape = 's32[1]{0}', space=sflag, size = 0x4, scoped, tag = 'scoped memory for tile.6']
  %s0 = inlined_call_operand.vmem [shape: f32[3], index: 0, kind: input, shape index: {}]
  %s1 = inlined_call_operand.vmem [shape: f32[2,3], index: 1, kind: output, shape index: {}]
  // Predicated region
  $region2: #{tile.6} parent=0 // pred_check
    _
  $region3: #{tile.6} parent=0 // pred_check_branch
    %3 = sbr.rel (0) target = $region5
  $region4: #{tile.6} parent=0 // pred_region
    _
  $region5: #{tile.6} parent=0 // pred_fallthru
    _
  %v4 = vld [vmem:[%s0] ss:$0 sm:$0xff]
  %5 = vst [vmem:[%s1] sm:$0x3] %v4

// kernel: _lambda_.1
$region0: #{_lambda_.1}
  #allocation0 [shape = 'u32[]', space=smem, size = 0x4, offset = 0x4, fixed_abs, tag = 'smem constant byte address 0x4 - core index']
  #allocation1 [shape = 'u32[144,128]{1,0:T(1,128)}', space=vmem, size = 0x12000, scoped, tag = 'internal scratch']
  %s0 = inlined_call_operand.vmem [shape: f32[6], index: 0, kind: input, shape index: {}]
  %s1 = inlined_call_operand.vmem [shape: f32[6,2,128], index: 1, kind: input, shape index: {}]
  %s2 = inlined_call_operand.vmem [shape: f32[6,2,128], index: 2, kind: input, shape index: {}]
  %s3 = inlined_call_operand.vmem [shape: f32[2,8,128], index: 3, kind: output, shape index: {}]
  %s4 = sld [smem:[#allocation0]]
  $region61: #{_lambda_.1} parent=0
    _
  %s6 = ssub.s32 1, %s4
  %s7 = scalar_select 0, %s6, %s4
  $region1: #{_lambda_.1} parent=0
    #allocation2 [shape = 'u8[512]{0}', space=smem, size = 0x200, scoped, tag = 'input window, operand 0, single buffered']
    #allocation3 [shape = 's32[2]{0}', space=sflag, size = 0x8, scoped, tag = 'scoped memory for _lambda_.1']
    %8 = vsyncpa [#allocation3], 0
    loop: start=0, step=1, limit=8
    $region2: #{_lambda_.1} parent=1 // loop_pre_header
      _
    $region3: #{_lambda_.1} parent=1 // loop_header
      %s10 = sphi 0, %s14
      %p11 = scmp.ge.s32.totalorder %s10, 8
      %s17 = sphi 0, %s36
      %s18 = sphi 0, %s32
      %s19 = sphi 0, %s28
      %s20 = sphi 0, %s17
      %s21 = sphi 0, %s18
      %s22 = sphi 0, %s19
      %s23 = sphi 0, %s20
      %s24 = sphi 0, %s21
      %s25 = sphi 0, %s22
      %s37 = sphi 0, %s37
      %s39 = sphi 0, %s37
      %s40 = sphi 0, %s39
      %s54 = sphi 0, %s40
      %s66 = sphi 0, %s68
      %s69 = sphi 0, %s66
      %s70 = sphi 0, %s69
      %s86 = sphi 0, %s70
      %s98 = sphi 0, %s100
      %s101 = sphi 0, %s98
      %s102 = sphi 0, %s101
      %s118 = sphi 0, %s102
      %s124 = sphi 0, %s126
      %s127 = sphi 0, %s124
      %s128 = sphi 0, %s127
      %s144 = sphi 0, %s128
    $region4: #{_lambda_.1} parent=1 // loop_header_branch
      %13 = sbr.rel (%p11) target = $region8
    $region5: #{_lambda_.1} parent=1 // loop_body
      %s15 = ssub.s32 %s10, 1
      %s16 = ssub.s32 %s10, 2
      %s26 = sadd.s32 1, %s19
      %p27 = scmp.ge.s32.totalorder %s26, 1
      %s28 = scalar_select %p27, 0, %s26
      %s29 = sadd.s32 1, %s18
      %s30 = scalar_select %p27, %s29, %s18
      %p31 = scmp.ge.s32.totalorder %s30, 3
      %s32 = scalar_select %p31, 0, %s30
      %s33 = sadd.s32 1, %s17
      %s34 = scalar_select %p31, %s33, %s17
      %p35 = scmp.ge.s32.totalorder %s34, 2
      %s36 = scalar_select %p35, 0, %s34
      %s38 = sadd.s32 %s37, 1
      %p41 = scmp.eq.s32.totalorder %s10, 5
      %p42 = scmp.ne.s32.totalorder %s37, %s39
      %p43 = scmp.eq.s32.totalorder %s10, 0
      %p44 = por %p42, %p43
      %p45 = scmp.ne.s32.totalorder %s37, %s39
      %p46 = scmp.eq.s32.totalorder %s15, 5
      %p47 = por %p45, %p46
      %p48 = scmp.ne.s32.totalorder %s39, %s40
      %p49 = scmp.eq.s32.totalorder %s15, 0
      %p50 = por %p48, %p49
      %p51 = scmp.ne.s32.totalorder %s39, %s40
      %p52 = scmp.eq.s32.totalorder %s16, 5
      %p53 = por %p51, %p52
      %p55 = scmp.ne.s32.totalorder %s40, %s54
      %p56 = scmp.eq.s32.totalorder %s16, 0
      %p57 = por %p55, %p56
      %s58 = smul.u32 %s17, 3
      %s59 = sadd.s32 %s58, %s18
      %s60 = smul.u32 %s36, 3
      %s61 = sadd.s32 %s60, %s32
      %s62 = ssub.s32 %s59, %s61
      %s63 = ssub.s32 %s19, %s28
      %s64 = sor.u32 %s62, %s63
      %p65 = scmp.eq.s32.totalorder %s64, 0
      %s67 = sadd.s32 %s66, 1
      %s68 = scalar_select %p65, %s66, %s67
      %p71 = pneg %p65
      %p72 = scmp.eq.s32.totalorder %s10, 5
      %p73 = por %p71, %p72
      %p74 = scmp.ne.s32.totalorder %s66, %s69
      %p75 = scmp.eq.s32.totalorder %s10, 0
      %p76 = por %p74, %p75
      %p77 = scmp.ne.s32.totalorder %s66, %s69
      %p78 = scmp.eq.s32.totalorder %s15, 5
      %p79 = por %p77, %p78
      %p80 = scmp.ne.s32.totalorder %s69, %s70
      %p81 = scmp.eq.s32.totalorder %s15, 0
      %p82 = por %p80, %p81
      %p83 = scmp.ne.s32.totalorder %s69, %s70
      %p84 = scmp.eq.s32.totalorder %s16, 5
      %p85 = por %p83, %p84
      %p87 = scmp.ne.s32.totalorder %s70, %s86
      %p88 = scmp.eq.s32.totalorder %s16, 0
      %p89 = por %p87, %p88
      %s90 = smul.u32 %s17, 3
      %s91 = sadd.s32 %s90, %s18
      %s92 = smul.u32 %s36, 3
      %s93 = sadd.s32 %s92, %s32
      %s94 = ssub.s32 %s91, %s93
      %s95 = ssub.s32 %s19, %s28
      %s96 = sor.u32 %s94, %s95
      %p97 = scmp.eq.s32.totalorder %s96, 0
      %s99 = sadd.s32 %s98, 1
      %s100 = scalar_select %p97, %s98, %s99
      %p103 = pneg %p97
      %p104 = scmp.eq.s32.totalorder %s10, 5
      %p105 = por %p103, %p104
      %p106 = scmp.ne.s32.totalorder %s98, %s101
      %p107 = scmp.eq.s32.totalorder %s10, 0
      %p108 = por %p106, %p107
      %p109 = scmp.ne.s32.totalorder %s98, %s101
      %p110 = scmp.eq.s32.totalorder %s15, 5
      %p111 = por %p109, %p110
      %p112 = scmp.ne.s32.totalorder %s101, %s102
      %p113 = scmp.eq.s32.totalorder %s15, 0
      %p114 = por %p112, %p113
      %p115 = scmp.ne.s32.totalorder %s101, %s102
      %p116 = scmp.eq.s32.totalorder %s16, 5
      %p117 = por %p115, %p116
      %p119 = scmp.ne.s32.totalorder %s102, %s118
      %p120 = scmp.eq.s32.totalorder %s16, 0
      %p121 = por %p119, %p120
      %s122 = ssub.s32 %s17, %s36
      %p123 = scmp.eq.s32.totalorder %s122, 0
      %s125 = sadd.s32 %s124, 1
      %s126 = scalar_select %p123, %s124, %s125
      %p129 = pneg %p123
      %p130 = scmp.eq.s32.totalorder %s10, 5
      %p131 = por %p129, %p130
      %p132 = scmp.ne.s32.totalorder %s124, %s127
      %p133 = scmp.eq.s32.totalorder %s10, 0
      %p134 = por %p132, %p133
      %p135 = scmp.ne.s32.totalorder %s124, %s127
      %p136 = scmp.eq.s32.totalorder %s15, 5
      %p137 = por %p135, %p136
      %p138 = scmp.ne.s32.totalorder %s127, %s128
      %p139 = scmp.eq.s32.totalorder %s15, 0
      %p140 = por %p138, %p139
      %p141 = scmp.ne.s32.totalorder %s127, %s128
      %p142 = scmp.eq.s32.totalorder %s16, 5
      %p143 = por %p141, %p142
      %p145 = scmp.ne.s32.totalorder %s128, %s144
      %p146 = scmp.eq.s32.totalorder %s16, 0
      %p147 = por %p145, %p146
      %p148 = scmp.le.s32.totalorder 1, %s10
      %p149 = scmp.lt.s32.totalorder %s10, 7
      %p150 = pnand %p148, %p149
      %p151 = pneg %p150
      // Predicated region
      $region9: #{_lambda_.1} parent=5 // pred_check
        _
      $region10: #{_lambda_.1} parent=5 // pred_check_branch
        %153 = sbr.rel (%p150) target = $region12
      $region11: #{_lambda_.1} parent=5 // pred_region
        %s154 = ssub.s32 %s10, 1
        // Predicated region
        $region13: #{_lambda_.1} parent=11 // pred_check
          %p155 = pneg %p50
        $region14: #{_lambda_.1} parent=11 // pred_check_branch
          %157 = sbr.rel (%p155) target = $region16
        $region15: #{_lambda_.1} parent=11 // pred_region
          %s159 = ssub.s32 16, 16
          %160 = vsyncadd [#allocation3], %s159
          %s162 = sshll.u32 %s0, 4
          %s163 = int_to_ptr.vmem [resolvable:$true] %s162
          %165 = dma.vmem_to_smem %s163, 16, [#allocation2], [#allocation3]
        $region16: #{_lambda_.1} parent=11 // pred_fallthru
          _
      $region12: #{_lambda_.1} parent=5 // pred_fallthru
        _
      %p166 = scmp.lt.s32.totalorder %s10, 6
      // Predicated region
      $region17: #{_lambda_.1} parent=5 // pred_check
        %p167 = pneg %p166
      $region18: #{_lambda_.1} parent=5 // pred_check_branch
        %169 = sbr.rel (%p167) target = $region20
      $region19: #{_lambda_.1} parent=5 // pred_region
        // Predicated region
        $region21: #{_lambda_.1} parent=19 // pred_check
          %p170 = pneg %p76
        $region22: #{_lambda_.1} parent=19 // pred_check_branch
          %172 = sbr.rel (%p170) target = $region24
        $region23: #{_lambda_.1} parent=19 // pred_region
          %s173 = smul.u32 %s17, 3
          %s174 = sadd.s32 %s173, %s18
          %s175 = smul.u32 4, %s19
          %s176 = ssub.s32 1, %s175
          %s177 = smul.u32 32, %s176
          %p178 = scmp.lt.s32.totalorder %s174, 5
          %s179 = scalar_select %p178, %s174, 5
          %p180 = scmp.lt.s32.totalorder %s175, 0
          %s181 = scalar_select %p180, %s175, 0
          %s182 = sadd.s32 %s181, %s179
          %s183 = smul.addr %s182, 2
          %s184 = scalar_lea.vmem %s1, %s183
          %s185 = smul.u32 %s17, 3
          %s186 = sadd.s32 %s185, %s18
          %s187 = smul.u32 4, %s19
          %s188 = ssub.s32 1, %s187
          %s189 = smul.u32 32, %s188
        $region24: #{_lambda_.1} parent=19 // pred_fallthru
          _
        // Predicated region
        $region25: #{_lambda_.1} parent=19 // pred_check
          %p190 = pneg %p108
        $region26: #{_lambda_.1} parent=19 // pred_check_branch
          %192 = sbr.rel (%p190) target = $region28
        $region27: #{_lambda_.1} parent=19 // pred_region
          %s193 = smul.u32 %s17, 3
          %s194 = sadd.s32 %s193, %s18
          %s195 = smul.u32 4, %s19
          %s196 = ssub.s32 1, %s195
          %s197 = smul.u32 32, %s196
          %p198 = scmp.lt.s32.totalorder %s194, 5
          %s199 = scalar_select %p198, %s194, 5
          %p200 = scmp.lt.s32.totalorder %s195, 0
          %s201 = scalar_select %p200, %s195, 0
          %s202 = sadd.s32 %s201, %s199
          %s203 = smul.addr %s202, 2
          %s204 = scalar_lea.vmem %s2, %s203
          %s205 = smul.u32 %s17, 3
          %s206 = sadd.s32 %s205, %s18
          %s207 = smul.u32 4, %s19
          %s208 = ssub.s32 1, %s207
          %s209 = smul.u32 32, %s208
        $region28: #{_lambda_.1} parent=19 // pred_fallthru
          _
      $region20: #{_lambda_.1} parent=5 // pred_fallthru
        _
      %p210 = scmp.le.s32.totalorder 1, %s10
      %p211 = scmp.lt.s32.totalorder %s10, 7
      %p212 = pnand %p210, %p211
      %p213 = pneg %p212
      // Predicated region
      $region29: #{_lambda_.1} parent=5 // pred_check
        _
      $region30: #{_lambda_.1} parent=5 // pred_check_branch
        %215 = sbr.rel (%p212) target = $region32
      $region31: #{_lambda_.1} parent=5 // pred_region
        %s216 = ssub.s32 %s10, 1
        // Predicated region
        $region33: #{_lambda_.1} parent=31 // pred_check
          %p217 = pneg %p50
        $region34: #{_lambda_.1} parent=31 // pred_check_branch
          %219 = sbr.rel (%p217) target = $region36
        $region35: #{_lambda_.1} parent=31 // pred_region
          %220 = dma.done [#allocation3], 16
        $region36: #{_lambda_.1} parent=31 // pred_fallthru
          _
        %221 = sfence
        %p222 = pneg %p50
        %p223 = pneg %p47
        %s224 = smul.u32 %s20, 3
        %s225 = sadd.s32 %s224, %s21
        %s226 = smul.u32 4, %s22
        %s227 = ssub.s32 1, %s226
        %s228 = smul.u32 32, %s227
        %p229 = scmp.lt.s32.totalorder %s225, 5
        %s230 = scalar_select %p229, %s225, 5
        %p231 = scmp.lt.s32.totalorder %s226, 0
        %s232 = scalar_select %p231, %s226, 0
        %s233 = sadd.s32 %s232, %s230
        %s234 = smul.addr %s233, 2
        %s235 = scalar_lea.vmem %s1, %s234
        %p236 = pneg %p82
        %p237 = pneg %p79
        %s238 = smul.u32 %s20, 3
        %s239 = sadd.s32 %s238, %s21
        %s240 = smul.u32 4, %s22
        %s241 = ssub.s32 1, %s240
        %s242 = smul.u32 32, %s241
        %p243 = scmp.lt.s32.totalorder %s239, 5
        %s244 = scalar_select %p243, %s239, 5
        %p245 = scmp.lt.s32.totalorder %s240, 0
        %s246 = scalar_select %p245, %s240, 0
        %s247 = sadd.s32 %s246, %s244
        %s248 = smul.addr %s247, 2
        %s249 = scalar_lea.vmem %s2, %s248
        %p250 = pneg %p114
        %p251 = pneg %p111
        %p252 = pneg %p140
        %p253 = pneg %p137
        %p254 = scmp.lt.s32.totalorder %s20, 1
        %s255 = scalar_select %p254, %s20, 1
        %s256 = smul.addr %s255, 8
        %s257 = scalar_lea.vmem %s3, %s256
        %s258 = smul.u32 %s20, 3
        %s259 = sadd.s32 %s258, %s21
        %s260 = smul.u32 4, %s22
        %s261 = ssub.s32 1, %s260
        %s262 = smul.u32 32, %s261
        %p263 = scmp.lt.s32.totalorder %s259, 5
        %s264 = scalar_select %p263, %s259, 5
        %p265 = scmp.lt.s32.totalorder %s260, 0
        %s266 = scalar_select %p265, %s260, 0
        %s267 = sadd.s32 %s266, %s264
        %s268 = smul.addr %s267, 2
        %s269 = scalar_lea.vmem %s1, %s268
        %s270 = smul.u32 %s20, 3
        %s271 = sadd.s32 %s270, %s21
        %s272 = smul.u32 4, %s22
        %s273 = ssub.s32 1, %s272
        %s274 = smul.u32 32, %s273
        %s275 = smul.u32 %s20, 3
        %s276 = sadd.s32 %s275, %s21
        %s277 = smul.u32 4, %s22
        %s278 = ssub.s32 1, %s277
        %s279 = smul.u32 32, %s278
        %p280 = scmp.lt.s32.totalorder %s276, 5
        %s281 = scalar_select %p280, %s276, 5
        %p282 = scmp.lt.s32.totalorder %s277, 0
        %s283 = scalar_select %p282, %s277, 0
        %s284 = sadd.s32 %s283, %s281
        %s285 = smul.addr %s284, 2
        %s286 = scalar_lea.vmem %s2, %s285
        %s287 = smul.u32 %s20, 3
        %s288 = sadd.s32 %s287, %s21
        %s289 = smul.u32 4, %s22
        %s290 = ssub.s32 1, %s289
        %s291 = smul.u32 32, %s290
        %p292 = scmp.lt.s32.totalorder %s20, 1
        %s293 = scalar_select %p292, %s20, 1
        %s294 = smul.addr %s293, 8
        %s295 = scalar_lea.vmem %s3, %s294
        %p296 = scmp.eq.s32.totalorder %s21, 0
        %p297 = scmp.eq.s32.totalorder %s22, 0
        %p298 = pnand %p296, %p297
        %p299 = pneg %p298
        // Predicated region
        $region37: #{_lambda_.1} parent=31 // pred_check
          _
        $region38: #{_lambda_.1} parent=31 // pred_check_branch
          %301 = sbr.rel (%p298) target = $region40
        $region39: #{_lambda_.1} parent=31 // pred_region
          %302 = vst [vmem:[%s295] sm:$0xff] 0.0
        $region40: #{_lambda_.1} parent=31 // pred_fallthru
          _
        %s303 = smul.u32 %s20, 3
        %s304 = sadd.s32 %s303, %s21
        %s305 = sld [smem:[#allocation2 + %s304]]
        %v306 = vld [vmem:[%s269] sm:$0xff]
        %v307 = vld [vmem:[%s286] sm:$0xff]
        %v308 = vsub.f32 %v306, %v307
        %v309 = vand.u32 2147483647, %v308
        %p310 = scmp.lt.s32.totalorder %s22, 0
        // Predicated region
        $region41: #{_lambda_.1} parent=31 // pred_check
          %p311 = pneg %p310
        $region42: #{_lambda_.1} parent=31 // pred_check_branch
          %313 = sbr.rel (%p311) target = $region44
        $region43: #{_lambda_.1} parent=31 // pred_region
          %v314 = vadd.f32 %v309, 0.0
          %v315 = vld [vmem:[%s295] sm:$0xff]
          %v316 = vstv %s305
          %v317 = vmul.f32 %v314, %v316
          %v318 = vadd.f32 %v315, %v317
          %319 = vst [vmem:[%s295] sm:$0xff] %v318
        $region44: #{_lambda_.1} parent=31 // pred_fallthru
          _
        // Predicated region
        $region45: #{_lambda_.1} parent=31 // pred_check
          %p320 = pneg %p297
        $region46: #{_lambda_.1} parent=31 // pred_check_branch
          %322 = sbr.rel (%p320) target = $region48
        $region47: #{_lambda_.1} parent=31 // pred_region
          %s323 = smul.u32 %s22, 8
          %v324 = vlaneseq
          %v325 = vshrl.u32 %v324, 7
          %v326 = vstv %s323
          %v327 = vadd.s32 %v326, %v325
          %vm328 = vcmp.lt.s32.totalorder %v327, 2
          %v329 = vsel %vm328, %v309, 0.0
          %v330 = vadd.f32 %v329, 0.0
          %v331 = vld [vmem:[%s295] sm:$0xff]
          %v332 = vstv %s305
          %v333 = vmul.f32 %v330, %v332
          %v334 = vadd.f32 %v331, %v333
          %335 = vst [vmem:[%s295] sm:$0xff] %v334
        $region48: #{_lambda_.1} parent=31 // pred_fallthru
          _
        %p336 = scmp.lt.s32.totalorder %s20, 1
        %s337 = scalar_select %p336, %s20, 1
        %s338 = smul.addr %s337, 8
        %s339 = scalar_lea.vmem %s3, %s338
        // Predicated region
        $region49: #{_lambda_.1} parent=31 // pred_check
          %p340 = pneg %p137
        $region50: #{_lambda_.1} parent=31 // pred_check_branch
          %342 = sbr.rel (%p340) target = $region52
        $region51: #{_lambda_.1} parent=31 // pred_region
          _
        $region52: #{_lambda_.1} parent=31 // pred_fallthru
          _
      $region32: #{_lambda_.1} parent=5 // pred_fallthru
        _
      %p343 = scmp.le.s32.totalorder 2, %s10
      // Predicated region
      $region53: #{_lambda_.1} parent=5 // pred_check
        %p344 = pneg %p343
      $region54: #{_lambda_.1} parent=5 // pred_check_branch
        %346 = sbr.rel (%p344) target = $region56
      $region55: #{_lambda_.1} parent=5 // pred_region
        %s347 = ssub.s32 %s10, 2
        // Predicated region
        $region57: #{_lambda_.1} parent=55 // pred_check
          %p348 = pneg %p143
        $region58: #{_lambda_.1} parent=55 // pred_check_branch
          %350 = sbr.rel (%p348) target = $region60
        $region59: #{_lambda_.1} parent=55 // pred_region
          %p351 = scmp.lt.s32.totalorder %s23, 1
          %s352 = scalar_select %p351, %s23, 1
          %s353 = smul.addr %s352, 8
          %s354 = scalar_lea.vmem %s3, %s353
        $region60: #{_lambda_.1} parent=55 // pred_fallthru
          _
      $region56: #{_lambda_.1} parent=5 // pred_fallthru
        _
    $region6: #{_lambda_.1} parent=1 // loop_footer
      %s14 = sadd.s32 1, %s10
    $region7: #{_lambda_.1} parent=1 // loop_footer_branch
      %9 = sbr.rel target = $region3
    $region8: #{_lambda_.1} parent=1 // loop_exit
      _
    %355 = vsyncpa [#allocation3], 1
    %s356 = scalar_lea.sflag [#allocation3], 1
    %357 = vsyncpa %s356, 1

</llo_original>
